<compile_context>
chip_gen: v7x
topology: tpu7x:2x2x1
jax: 0.10.0
libtpu: 0.0.40
codegen_flags: <defaults>
</compile_context>

<pallas_src>
import math

import jax
import jax.numpy as jnp
from jax.experimental import pallas as pl
from jax.experimental.pallas import tpu as pltpu


def _finite_horizon_policy_kernel(
    x_ref,            # (TB, obs_dim) f32 -- natural batch-major layout, streamed
    w1_ref, b1_ref,   # (H1, obs_dim) mm_dtype, (H1, 1) f32  [virtual_t folded into b1]
    w2_ref, b2_ref,   # (H2, H1)      mm_dtype, (H2, 1) f32
    w3_ref, b3_ref,   # (act_dim, H2) mm_dtype, (act_dim, 1) f32
    scale_ref,        # (act_dim, 1) f32 = (act_high - act_low) / 2
    offset_ref,       # (act_dim, 1) f32 = (act_high + act_low) / 2
    out_ref,          # (act_dim, TB) f32 -- lane-dense, unmasked store
):
    mm_dtype = w1_ref.dtype
    # Transpose the (TB, obs_dim) tile to lane-dense (obs_dim, TB) on the XLU
    # (effectively free next to the MXU work), then cast for the MXU.
    x = x_ref[...].T.astype(mm_dtype)                                    # (obs_dim, TB)
    h = jnp.dot(w1_ref[...], x, preferred_element_type=jnp.float32) + b1_ref[...]
    h = jnp.maximum(h, 0.0)                                  # hidden activation: ReLU (f32)
    h = jnp.dot(w2_ref[...], h.astype(mm_dtype),
                preferred_element_type=jnp.float32) + b2_ref[...]
    h = jnp.maximum(h, 0.0)                                  # hidden activation: ReLU (f32)
    y = jnp.dot(w3_ref[...], h.astype(mm_dtype),
                preferred_element_type=jnp.float32) + b3_ref[...]
    # output activation: Identity, then action-limit squash (all pointwise in f32)
    out_ref[...] = (scale_ref[...] * jnp.tanh(y) + offset_ref[...]).astype(out_ref.dtype)


def _round_up(x, m):
    return ((x + m - 1) // m) * m


def finite_horizon_policy_forward(
    obs, params, act_high_lim, act_low_lim, virtual_t=1.0,
    *, block_b=8192, matmul_dtype=jnp.bfloat16, vmem_limit_bytes=None,
):
    """obs: (B, obs_dim) f32.  params: [(w1,b1),(w2,b2),(w3,b3)] in PyTorch layout
    (w: (out, in), b: (out,)), with w1 expecting obs_dim+1 inputs (last = virtual_t).
    Returns the (B, act_dim) action."""
    (w1, b1), (w2, b2), (w3, b3) = params
    B, obs_dim = obs.shape
    H1, H2, act_dim = w1.shape[0], w2.shape[0], w3.shape[0]

    # Fold the virtual-time column into the first-layer bias (no in-kernel concat).
    w1_obs = w1[:, :obs_dim].astype(matmul_dtype)                        # (H1, obs_dim)
    b1_eff = (b1[:, None] + jnp.float32(virtual_t) * w1[:, obs_dim:]).astype(jnp.float32)
    w2c = w2.astype(matmul_dtype)
    w3c = w3.astype(matmul_dtype)
    b2c = b2[:, None].astype(jnp.float32)
    b3c = b3[:, None].astype(jnp.float32)
    scale = ((act_high_lim - act_low_lim) * 0.5)[:, None].astype(jnp.float32)
    offset = ((act_high_lim + act_low_lim) * 0.5)[:, None].astype(jnp.float32)

    # Batch tile: big (amortizes per-step overhead), lane-aligned (multiple of 128),
    # and split so batches >= 2048 still give >= 2 tiles for v7x megacore sharding.
    tb = min(_round_up(block_b, 128), _round_up(B, 128))
    if B >= 2048:
        tb = min(tb, _round_up(pl.cdiv(B, 2), 128))
    n_tiles = pl.cdiv(B, tb)
    b_pad = n_tiles * tb

    obs_f = obs.astype(jnp.float32)
    if b_pad != B:
        obs_f = jnp.pad(obs_f, ((0, b_pad - B), (0, 0)))     # only when B % tb != 0

    def const(shape):
        # VMEM-resident across all grid steps; single-buffered, never re-DMA'd.
        return pl.BlockSpec(shape, lambda i: (0, 0), pipeline_mode=pl.Buffered(1))

    cp_kwargs = dict(dimension_semantics=("parallel",))
    if vmem_limit_bytes is not None:
        cp_kwargs["vmem_limit_bytes"] = vmem_limit_bytes

    out_t = pl.pallas_call(
        _finite_horizon_policy_kernel,
        out_shape=jax.ShapeDtypeStruct((act_dim, b_pad), jnp.float32),
        grid=(n_tiles,),
        in_specs=[
            pl.BlockSpec((tb, obs_dim), lambda i: (i, 0)),   # obs streamed, natural layout
            const((H1, obs_dim)), const((H1, 1)),
            const((H2, H1)), const((H2, 1)),
            const((act_dim, H2)), const((act_dim, 1)),
            const((act_dim, 1)), const((act_dim, 1)),
        ],
        out_specs=pl.BlockSpec((act_dim, tb), lambda i: (0, i)),
        compiler_params=pltpu.CompilerParams(**cp_kwargs),
    )(obs_f, w1_obs, b1_eff, w2c, b2c, w3c, b3c, scale, offset)

    # Back to the module's (B, act_dim) convention (tiny act_dim x B transpose; a
    # (feature, batch) consumer would keep out_t as-is).  Padded lanes are dropped.
    return out_t[:, :B].T


def _init_mlp_params(key, sizes):
    """Matches GOPS init_weights(): weight ~ U(-sqrt(6/(fan_in+fan_out)), +...),
    bias = 0.  Weights stored in PyTorch (out_features, in_features) layout."""
    params = []
    for j in range(len(sizes) - 1):
        fan_in, fan_out = sizes[j], sizes[j + 1]
        key, sub = jax.random.split(key)
        bound = math.sqrt(6.0 / (fan_in + fan_out))
        w = jax.random.uniform(
            sub, (fan_out, fan_in), minval=-bound, maxval=bound, dtype=jnp.float32
        )
        b = jnp.zeros((fan_out,), dtype=jnp.float32)
        params.append((w, b))
    return key, params


def _reference_forward(obs, params, act_high_lim, act_low_lim, virtual_t=1.0):
    (w1, b1), (w2, b2), (w3, b3) = params
    t_col = jnp.full((obs.shape[0], 1), virtual_t, dtype=jnp.float32)
    x = jnp.concatenate([obs, t_col], axis=1)
    h = jnp.maximum(x @ w1.T + b1, 0.0)
    h = jnp.maximum(h @ w2.T + b2, 0.0)
    y = h @ w3.T + b3
    return (act_high_lim - act_low_lim) / 2 * jnp.tanh(y) \
        + (act_high_lim + act_low_lim) / 2


if __name__ == "__main__":
    # Small shapes consistent with the module.
    batch = 2
    obs_dim = 8
    act_dim = 4
    hidden_sizes = (32, 32)
    virtual_t = 1.0

    pi_sizes = [obs_dim + 1] + list(hidden_sizes) + [act_dim]

    key = jax.random.PRNGKey(0)
    key, params = _init_mlp_params(key, pi_sizes)

    act_high_lim = 2.0 * jnp.ones((act_dim,), dtype=jnp.float32)
    act_low_lim = -1.0 * jnp.ones((act_dim,), dtype=jnp.float32)

    key, sub = jax.random.split(key)
    obs = jax.random.normal(sub, (batch, obs_dim), dtype=jnp.float32)

    ref = _reference_forward(obs, params, act_high_lim, act_low_lim, virtual_t)

    # f32-matmul path: bit-tight check of the kernel structure vs. the f32 reference.
    out_f32 = jax.block_until_ready(
        finite_horizon_policy_forward(
            obs, params, act_high_lim, act_low_lim, virtual_t,
            matmul_dtype=jnp.float32,
        )
    )
    assert out_f32.shape == (batch, act_dim)
    assert jnp.allclose(out_f32, ref, atol=1e-4, rtol=1e-4), float(
        jnp.max(jnp.abs(out_f32 - ref))
    )

    # Default fast path: bf16 MXU operands, f32 accumulation and pointwise math.
    out = jax.block_until_ready(
        finite_horizon_policy_forward(obs, params, act_high_lim, act_low_lim, virtual_t)
    )
    assert out.shape == (batch, act_dim)
    assert jnp.allclose(out, ref, atol=3e-2, rtol=3e-2), float(
        jnp.max(jnp.abs(out - ref))
    )

    print("KERNEL_OK")
</pallas_src>

<mosaic_0001>
module attributes {stable_mosaic.version = 11 : i64} {
  func.func @_finite_horizon_policy_kernel(%arg0: i32, %arg1: memref<128x8xf32, #tpu.memory_space<vmem>>, %arg2: memref<32x8xf32, #tpu.memory_space<vmem>>, %arg3: memref<32x1xf32, #tpu.memory_space<vmem>>, %arg4: memref<32x32xf32, #tpu.memory_space<vmem>>, %arg5: memref<32x1xf32, #tpu.memory_space<vmem>>, %arg6: memref<4x32xf32, #tpu.memory_space<vmem>>, %arg7: memref<4x1xf32, #tpu.memory_space<vmem>>, %arg8: memref<4x1xf32, #tpu.memory_space<vmem>>, %arg9: memref<4x1xf32, #tpu.memory_space<vmem>>, %arg10: memref<4x128xf32, #tpu.memory_space<vmem>>) attributes {dimension_semantics = [#tpu.dimension_semantics<parallel>], iteration_bounds = array<i64: 1>, scalar_prefetch = 0 : i64, scratch_operands = 0 : i64, tpu.core_type = #tpu.core_type<tc>, window_params = [{transform_indices = @transform_0, window_bounds = array<i64: 128, 8>}, {pipeline_mode = #tpu.pipeline_mode<synchronous>, transform_indices = @transform_1, window_bounds = array<i64: 32, 8>}, {pipeline_mode = #tpu.pipeline_mode<synchronous>, transform_indices = @transform_2, window_bounds = array<i64: 32, 1>}, {pipeline_mode = #tpu.pipeline_mode<synchronous>, transform_indices = @transform_3, window_bounds = array<i64: 32, 32>}, {pipeline_mode = #tpu.pipeline_mode<synchronous>, transform_indices = @transform_4, window_bounds = array<i64: 32, 1>}, {pipeline_mode = #tpu.pipeline_mode<synchronous>, transform_indices = @transform_5, window_bounds = array<i64: 4, 32>}, {pipeline_mode = #tpu.pipeline_mode<synchronous>, transform_indices = @transform_6, window_bounds = array<i64: 4, 1>}, {pipeline_mode = #tpu.pipeline_mode<synchronous>, transform_indices = @transform_7, window_bounds = array<i64: 4, 1>}, {pipeline_mode = #tpu.pipeline_mode<synchronous>, transform_indices = @transform_8, window_bounds = array<i64: 4, 1>}, {transform_indices = @transform_9, window_bounds = array<i64: 4, 128>}]} {
    %c0 = arith.constant 0 : index
    %c0_0 = arith.constant 0 : index
    %0 = vector.load %arg1[%c0, %c0_0] : memref<128x8xf32, #tpu.memory_space<vmem>>, vector<128x8xf32>
    %1 = tpu.transpose %0, [1, 0] : vector<128x8xf32> -> vector<8x128xf32>
    %c0_1 = arith.constant 0 : index
    %c0_2 = arith.constant 0 : index
    %2 = vector.load %arg2[%c0_1, %c0_2] : memref<32x8xf32, #tpu.memory_space<vmem>>, vector<32x8xf32>
    %cst = arith.constant dense<0.000000e+00> : vector<32x128xf32>
    %3 = tpu.matmul %2, %1, %cst {dimension_numbers = #tpu.dot_dimension_numbers<[1], [0], [0], [1], [0, 0, 1, 1], [], []>} : vector<32x8xf32>, vector<8x128xf32>, vector<32x128xf32> -> vector<32x128xf32>
    %c0_3 = arith.constant 0 : index
    %c0_4 = arith.constant 0 : index
    %4 = vector.load %arg3[%c0_3, %c0_4] : memref<32x1xf32, #tpu.memory_space<vmem>>, vector<32x1xf32>
    %5 = vector.broadcast %4 : vector<32x1xf32> to vector<32x128xf32>
    %6 = arith.addf %3, %5 : vector<32x128xf32>
    %cst_5 = arith.constant 0.000000e+00 : f32
    %7 = vector.broadcast %cst_5 : f32 to vector<32x128xf32>
    %8 = arith.maximumf %6, %7 : vector<32x128xf32>
    %c0_6 = arith.constant 0 : index
    %c0_7 = arith.constant 0 : index
    %9 = vector.load %arg4[%c0_6, %c0_7] : memref<32x32xf32, #tpu.memory_space<vmem>>, vector<32x32xf32>
    %cst_8 = arith.constant dense<0.000000e+00> : vector<32x128xf32>
    %10 = tpu.matmul %9, %8, %cst_8 {dimension_numbers = #tpu.dot_dimension_numbers<[1], [0], [0], [1], [0, 0, 1, 1], [], []>} : vector<32x32xf32>, vector<32x128xf32>, vector<32x128xf32> -> vector<32x128xf32>
    %c0_9 = arith.constant 0 : index
    %c0_10 = arith.constant 0 : index
    %11 = vector.load %arg5[%c0_9, %c0_10] : memref<32x1xf32, #tpu.memory_space<vmem>>, vector<32x1xf32>
    %12 = vector.broadcast %11 : vector<32x1xf32> to vector<32x128xf32>
    %13 = arith.addf %10, %12 : vector<32x128xf32>
    %cst_11 = arith.constant 0.000000e+00 : f32
    %14 = vector.broadcast %cst_11 : f32 to vector<32x128xf32>
    %15 = arith.maximumf %13, %14 : vector<32x128xf32>
    %c0_12 = arith.constant 0 : index
    %c0_13 = arith.constant 0 : index
    %16 = vector.load %arg6[%c0_12, %c0_13] : memref<4x32xf32, #tpu.memory_space<vmem>>, vector<4x32xf32>
    %cst_14 = arith.constant dense<0.000000e+00> : vector<4x128xf32>
    %17 = tpu.matmul %16, %15, %cst_14 {dimension_numbers = #tpu.dot_dimension_numbers<[1], [0], [0], [1], [0, 0, 1, 1], [], []>} : vector<4x32xf32>, vector<32x128xf32>, vector<4x128xf32> -> vector<4x128xf32>
    %c0_15 = arith.constant 0 : index
    %c0_16 = arith.constant 0 : index
    %18 = vector.load %arg7[%c0_15, %c0_16] : memref<4x1xf32, #tpu.memory_space<vmem>>, vector<4x1xf32>
    %19 = vector.broadcast %18 : vector<4x1xf32> to vector<4x128xf32>
    %20 = arith.addf %17, %19 : vector<4x128xf32>
    %c0_17 = arith.constant 0 : index
    %c0_18 = arith.constant 0 : index
    %21 = vector.load %arg8[%c0_17, %c0_18] : memref<4x1xf32, #tpu.memory_space<vmem>>, vector<4x1xf32>
    %22 = math.tanh %20 : vector<4x128xf32>
    %23 = vector.broadcast %21 : vector<4x1xf32> to vector<4x128xf32>
    %24 = arith.mulf %23, %22 : vector<4x128xf32>
    %c0_19 = arith.constant 0 : index
    %c0_20 = arith.constant 0 : index
    %25 = vector.load %arg9[%c0_19, %c0_20] : memref<4x1xf32, #tpu.memory_space<vmem>>, vector<4x1xf32>
    %26 = vector.broadcast %25 : vector<4x1xf32> to vector<4x128xf32>
    %27 = arith.addf %24, %26 : vector<4x128xf32>
    %c0_21 = arith.constant 0 : index
    %c0_22 = arith.constant 0 : index
    %28 = vector.load %arg10[%c0_21, %c0_22] : memref<4x128xf32, #tpu.memory_space<vmem>>, vector<4x128xf32>
    tpu.vector_store %arg10[%c0_21, %c0_22], %27 {strides = array<i32>} : memref<4x128xf32, #tpu.memory_space<vmem>>, vector<4x128xf32>,
    return
  }
  func.func @transform_0(%arg0: i32) -> (i32, i32) {
    %c0_i32 = arith.constant 0 : i32
    %c0_i32_0 = arith.constant 0 : i32
    return %arg0, %c0_i32 : i32, i32
  }
  func.func @transform_1(%arg0: i32) -> (i32, i32) {
    %c0_i32 = arith.constant 0 : i32
    %c0_i32_0 = arith.constant 0 : i32
    %c0_i32_1 = arith.constant 0 : i32
    return %c0_i32, %c0_i32_0 : i32, i32
  }
  func.func @transform_2(%arg0: i32) -> (i32, i32) {
    %c0_i32 = arith.constant 0 : i32
    %c0_i32_0 = arith.constant 0 : i32
    %c0_i32_1 = arith.constant 0 : i32
    return %c0_i32, %c0_i32_0 : i32, i32
  }
  func.func @transform_3(%arg0: i32) -> (i32, i32) {
    %c0_i32 = arith.constant 0 : i32
    %c0_i32_0 = arith.constant 0 : i32
    %c0_i32_1 = arith.constant 0 : i32
    return %c0_i32, %c0_i32_0 : i32, i32
  }
  func.func @transform_4(%arg0: i32) -> (i32, i32) {
    %c0_i32 = arith.constant 0 : i32
    %c0_i32_0 = arith.constant 0 : i32
    %c0_i32_1 = arith.constant 0 : i32
    return %c0_i32, %c0_i32_0 : i32, i32
  }
  func.func @transform_5(%arg0: i32) -> (i32, i32) {
    %c0_i32 = arith.constant 0 : i32
    %c0_i32_0 = arith.constant 0 : i32
    %c0_i32_1 = arith.constant 0 : i32
    return %c0_i32, %c0_i32_0 : i32, i32
  }
  func.func @transform_6(%arg0: i32) -> (i32, i32) {
    %c0_i32 = arith.constant 0 : i32
    %c0_i32_0 = arith.constant 0 : i32
    %c0_i32_1 = arith.constant 0 : i32
    return %c0_i32, %c0_i32_0 : i32, i32
  }
  func.func @transform_7(%arg0: i32) -> (i32, i32) {
    %c0_i32 = arith.constant 0 : i32
    %c0_i32_0 = arith.constant 0 : i32
    %c0_i32_1 = arith.constant 0 : i32
    return %c0_i32, %c0_i32_0 : i32, i32
  }
  func.func @transform_8(%arg0: i32) -> (i32, i32) {
    %c0_i32 = arith.constant 0 : i32
    %c0_i32_0 = arith.constant 0 : i32
    %c0_i32_1 = arith.constant 0 : i32
    return %c0_i32, %c0_i32_0 : i32, i32
  }
  func.func @transform_9(%arg0: i32) -> (i32, i32) {
    %c0_i32 = arith.constant 0 : i32
    %c0_i32_0 = arith.constant 0 : i32
    return %c0_i32, %arg0 : i32, i32
  }
}

</mosaic_0001>

<llo_original>
// kernel: tpu_custom_call.1
$region0: #{tpu_custom_call.1}
  #allocation0 [shape = 'u32[]', space=smem, size = 0x4, offset = 0x4, fixed_abs, tag = 'smem constant byte address 0x4 - core index']
  #allocation1 [shape = 'u32[144,128]{1,0:T(1,128)}', space=vmem, size = 0x12000, scoped, tag = 'internal scratch']
  %s0 = inlined_call_operand.vmem [shape: f32[128,8], index: 0, kind: input, shape index: {}]
  %s1 = inlined_call_operand.vmem [shape: f32[32,8], index: 1, kind: input, shape index: {}]
  %s2 = inlined_call_operand.vmem [shape: f32[32,1], index: 2, kind: input, shape index: {}]
  %s3 = inlined_call_operand.vmem [shape: f32[32,32], index: 3, kind: input, shape index: {}]
  %s4 = inlined_call_operand.vmem [shape: f32[32,1], index: 4, kind: input, shape index: {}]
  %s5 = inlined_call_operand.vmem [shape: f32[4,32], index: 5, kind: input, shape index: {}]
  %s6 = inlined_call_operand.vmem [shape: f32[4,1], index: 6, kind: input, shape index: {}]
  %s7 = inlined_call_operand.vmem [shape: f32[4,1], index: 7, kind: input, shape index: {}]
  %s8 = inlined_call_operand.vmem [shape: f32[4,1], index: 8, kind: input, shape index: {}]
  %s9 = inlined_call_operand.hbm [shape: f32[4,128], index: 9, kind: output, shape index: {}]
  %s10 = sld [smem:[#allocation0]]
  $region46: #{tpu_custom_call.1} parent=0
    _
  %s12 = ssub.s32 1, %s10
  %s13 = scalar_select 0, %s12, %s10
  $region1: #{tpu_custom_call.1} parent=0
    #allocation2 [shape = 'u8[2048]{0}', space=vmem, size = 0x800, scoped, tag = 'output window, operand 0, single buffered']
    #allocation3 [shape = 's32[1]{0}', space=sflag, size = 0x4, scoped, tag = 'scoped memory for tpu_custom_call.1']
    %14 = vsyncpa [#allocation3], 0
    // Predicated region
    $region2: #{tpu_custom_call.1} parent=1 // pred_check
      _
    $region3: #{tpu_custom_call.1} parent=1 // pred_check_branch
      %16 = sbr.rel (0) target = $region5
    $region4: #{tpu_custom_call.1} parent=1 // pred_region
      _
    $region5: #{tpu_custom_call.1} parent=1 // pred_fallthru
      _
    // Predicated region
    $region6: #{tpu_custom_call.1} parent=1 // pred_check
      _
    $region7: #{tpu_custom_call.1} parent=1 // pred_check_branch
      %18 = sbr.rel (0) target = $region9
    $region8: #{tpu_custom_call.1} parent=1 // pred_region
      _
    $region9: #{tpu_custom_call.1} parent=1 // pred_fallthru
      _
    // Predicated region
    $region10: #{tpu_custom_call.1} parent=1 // pred_check
      _
    $region11: #{tpu_custom_call.1} parent=1 // pred_check_branch
      %20 = sbr.rel (0) target = $region13
    $region12: #{tpu_custom_call.1} parent=1 // pred_region
      _
    $region13: #{tpu_custom_call.1} parent=1 // pred_fallthru
      _
    // Predicated region
    $region14: #{tpu_custom_call.1} parent=1 // pred_check
      _
    $region15: #{tpu_custom_call.1} parent=1 // pred_check_branch
      %22 = sbr.rel (0) target = $region17
    $region16: #{tpu_custom_call.1} parent=1 // pred_region
      _
    $region17: #{tpu_custom_call.1} parent=1 // pred_fallthru
      _
    // Predicated region
    $region18: #{tpu_custom_call.1} parent=1 // pred_check
      _
    $region19: #{tpu_custom_call.1} parent=1 // pred_check_branch
      %24 = sbr.rel (0) target = $region21
    $region20: #{tpu_custom_call.1} parent=1 // pred_region
      _
    $region21: #{tpu_custom_call.1} parent=1 // pred_fallthru
      _
    // Predicated region
    $region22: #{tpu_custom_call.1} parent=1 // pred_check
      _
    $region23: #{tpu_custom_call.1} parent=1 // pred_check_branch
      %26 = sbr.rel (0) target = $region25
    $region24: #{tpu_custom_call.1} parent=1 // pred_region
      _
    $region25: #{tpu_custom_call.1} parent=1 // pred_fallthru
      _
    // Predicated region
    $region26: #{tpu_custom_call.1} parent=1 // pred_check
      _
    $region27: #{tpu_custom_call.1} parent=1 // pred_check_branch
      %28 = sbr.rel (0) target = $region29
    $region28: #{tpu_custom_call.1} parent=1 // pred_region
      _
    $region29: #{tpu_custom_call.1} parent=1 // pred_fallthru
      _
    // Predicated region
    $region30: #{tpu_custom_call.1} parent=1 // pred_check
      _
    $region31: #{tpu_custom_call.1} parent=1 // pred_check_branch
      %30 = sbr.rel (0) target = $region33
    $region32: #{tpu_custom_call.1} parent=1 // pred_region
      _
    $region33: #{tpu_custom_call.1} parent=1 // pred_fallthru
      _
    // Predicated region
    $region34: #{tpu_custom_call.1} parent=1 // pred_check
      _
    $region35: #{tpu_custom_call.1} parent=1 // pred_check_branch
      %32 = sbr.rel (0) target = $region37
    $region36: #{tpu_custom_call.1} parent=1 // pred_region
      _
    $region37: #{tpu_custom_call.1} parent=1 // pred_fallthru
      _
    %v33 = vld [vmem:[%s0] sm:$0xff]
    %v34 = vld [vmem:[%s0 + $0x8] sm:$0xff]
    %v35 = vld [vmem:[%s0 + $0x10] sm:$0xff]
    %v36 = vld [vmem:[%s0 + $0x18] sm:$0xff]
    %v37 = vld [vmem:[%s0 + $0x20] sm:$0xff]
    %v38 = vld [vmem:[%s0 + $0x28] sm:$0xff]
    %v39 = vld [vmem:[%s0 + $0x30] sm:$0xff]
    %v40 = vld [vmem:[%s0 + $0x38] sm:$0xff]
    %v41 = vld [vmem:[%s0 + $0x40] sm:$0xff]
    %v42 = vld [vmem:[%s0 + $0x48] sm:$0xff]
    %v43 = vld [vmem:[%s0 + $0x50] sm:$0xff]
    %v44 = vld [vmem:[%s0 + $0x58] sm:$0xff]
    %v45 = vld [vmem:[%s0 + $0x60] sm:$0xff]
    %v46 = vld [vmem:[%s0 + $0x68] sm:$0xff]
    %v47 = vld [vmem:[%s0 + $0x70] sm:$0xff]
    %v48 = vld [vmem:[%s0 + $0x78] sm:$0xff]
    %v49 = vld [vmem:[%s1] sm:$0xff]
    %v50 = vld [vmem:[%s1 + $0x8] sm:$0xff]
    %v51 = vld [vmem:[%s1 + $0x10] sm:$0xff]
    %v52 = vld [vmem:[%s1 + $0x18] sm:$0xff]
    %v53 = vld [vmem:[%s2] sm:$0xff]
    %v54 = vld [vmem:[%s2 + $0x8] sm:$0xff]
    %v55 = vld [vmem:[%s2 + $0x10] sm:$0xff]
    %v56 = vld [vmem:[%s2 + $0x18] sm:$0xff]
    %58 = vset.pattern.permute.xlu0 0
    %59 = vperm.xlu0 %58, %v53
    %v60 = vpop.permute.xlu0 %59
    %63 = vset.pattern.permute.xlu0 0
    %64 = vperm.xlu0 %63, %v54
    %v65 = vpop.permute.xlu0 %64
    %68 = vset.pattern.permute.xlu0 0
    %69 = vperm.xlu0 %68, %v55
    %v70 = vpop.permute.xlu0 %69
    %73 = vset.pattern.permute.xlu0 0
    %74 = vperm.xlu0 %73, %v56
    %v75 = vpop.permute.xlu0 %74
    %vm77 = vcmask 64512
    %v79 = vsel %vm77, %v49, 0
    %v82 = vsel %vm77, %v50, 0
    %v85 = vsel %vm77, %v51, 0
    %v88 = vsel %vm77, %v52, 0
    %v91 = vsel %vm77, %v33, 0
    %v94 = vsel %vm77, %v34, 0
    %v97 = vsel %vm77, %v35, 0
    %v100 = vsel %vm77, %v36, 0
    %v103 = vsel %vm77, %v37, 0
    %v106 = vsel %vm77, %v38, 0
    %v109 = vsel %vm77, %v39, 0
    %v112 = vsel %vm77, %v40, 0
    %v115 = vsel %vm77, %v41, 0
    %v118 = vsel %vm77, %v42, 0
    %v121 = vsel %vm77, %v43, 0
    %v124 = vsel %vm77, %v44, 0
    %v127 = vsel %vm77, %v45, 0
    %v130 = vsel %vm77, %v46, 0
    %v133 = vsel %vm77, %v47, 0
    %v136 = vsel %vm77, %v48, 0
    %138 = vmatprep.subr.mxu0 0.0
    %139 = vmatpush1.xpose.msra.mxu0 %v91
    %140 = vmatprep.subr.mxu0 0.0
    %141 = vmatpush1.xpose.msra.mxu0 %v94
    %142 = vmatprep.subr.mxu0 0.0
    %143 = vmatpush1.xpose.msra.mxu0 %v97
    %144 = vmatprep.subr.mxu0 0.0
    %145 = vmatpush1.xpose.msra.mxu0 %v100
    %146 = vmatprep.subr.mxu0 0.0
    %147 = vmatpush1.xpose.msra.mxu0 %v103
    %148 = vmatprep.subr.mxu0 0.0
    %149 = vmatpush1.xpose.msra.mxu0 %v106
    %150 = vmatprep.subr.mxu0 0.0
    %151 = vmatpush1.xpose.msra.mxu0 %v109
    %152 = vmatprep.subr.mxu0 0.0
    %153 = vmatpush1.xpose.msra.mxu0 %v112
    %154 = vmatprep.subr.mxu0 0.0
    %155 = vmatpush1.xpose.msra.mxu0 %v115
    %156 = vmatprep.subr.mxu0 0.0
    %157 = vmatpush1.xpose.msra.mxu0 %v118
    %158 = vmatprep.subr.mxu0 0.0
    %159 = vmatpush1.xpose.msra.mxu0 %v121
    %160 = vmatprep.subr.mxu0 0.0
    %161 = vmatpush1.xpose.msra.mxu0 %v124
    %162 = vmatprep.subr.mxu0 0.0
    %163 = vmatpush1.xpose.msra.mxu0 %v127
    %164 = vmatprep.subr.mxu0 0.0
    %165 = vmatpush1.xpose.msra.mxu0 %v130
    %166 = vmatprep.subr.mxu0 0.0
    %167 = vmatpush1.xpose.msra.mxu0 %v133
    %168 = vmatprep.subr.mxu0 0.0
    %169 = vmatpush1.xpose.msra.mxu0 %v136
    %170 = vmatprep.subr.mxu0 0.0
    %171 = vmatpush1.xpose.msra.mxu0 0.0
    %172 = vmatprep.subr.mxu0 0.0
    %173 = vmatpush1.xpose.msra.mxu0 0.0
    %174 = vmatprep.subr.mxu0 0.0
    %175 = vmatpush1.xpose.msra.mxu0 0.0
    %176 = vmatprep.subr.mxu0 0.0
    %177 = vmatpush1.xpose.msra.mxu0 0.0
    %178 = vmatprep.subr.mxu0 0.0
    %179 = vmatpush1.xpose.msra.mxu0 0.0
    %180 = vmatprep.subr.mxu0 0.0
    %181 = vmatpush1.xpose.msra.mxu0 0.0
    %182 = vmatprep.subr.mxu0 0.0
    %183 = vmatpush1.xpose.msra.mxu0 0.0
    %184 = vmatprep.subr.mxu0 0.0
    %185 = vmatpush1.xpose.msra.mxu0 0.0
    %186 = vmatprep.subr.mxu0 0.0
    %187 = vmatpush1.xpose.msra.mxu0 0.0
    %188 = vmatprep.subr.mxu0 0.0
    %189 = vmatpush1.xpose.msra.mxu0 0.0
    %190 = vmatprep.subr.mxu0 0.0
    %191 = vmatpush1.xpose.msra.mxu0 0.0
    %192 = vmatprep.subr.mxu0 0.0
    %193 = vmatpush1.xpose.msra.mxu0 0.0
    %194 = vmatprep.subr.mxu0 0.0
    %195 = vmatpush1.xpose.msra.mxu0 0.0
    %196 = vmatprep.subr.mxu0 0.0
    %197 = vmatpush1.xpose.msra.mxu0 0.0
    %198 = vmatprep.subr.mxu0 0.0
    %199 = vmatpush1.xpose.msra.mxu0 0.0
    %200 = vmatprep.subr.mxu0 0.0
    %201 = vmatpush1.xpose.msra.mxu0 0.0
    %202 = vmatprep.mubr.f32.mxu0 0.0
    %203 = vmatmul.mubr.f32.gmra.mrb[0].mxu0 %v79
    %v204 = vpop.f32.mrb[0].mxu0
    %v205 = vadd.f32 %v60, %v204
    %v206 = vpop.f32.mrb[0].mxu0
    %207 = vmatprep.mubr.f32.mxu0 0.0
    %208 = vmatmul.mubr.f32.gmra.mrb[0].mxu0 %v82
    %v209 = vpop.f32.mrb[0].mxu0
    %v210 = vadd.f32 %v65, %v209
    %v211 = vpop.f32.mrb[0].mxu0
    %212 = vmatprep.mubr.f32.mxu0 0.0
    %213 = vmatmul.mubr.f32.gmra.mrb[0].mxu0 %v85
    %v214 = vpop.f32.mrb[0].mxu0
    %v215 = vadd.f32 %v70, %v214
    %v216 = vpop.f32.mrb[0].mxu0
    %217 = vmatprep.mubr.f32.mxu0 0.0
    %218 = vmatmul.mubr.f32.gmra.mrb[0].mxu0 %v88
    %v219 = vpop.f32.mrb[0].mxu0
    %v220 = vadd.f32 %v75, %v219
    %v221 = vpop.f32.mrb[0].mxu0
    %222 = vdwg.mxu0
    %v223 = vmax.f32 %v205, 0.0
    %v224 = vmax.f32 %v210, 0.0
    %v225 = vmax.f32 %v215, 0.0
    %v226 = vmax.f32 %v220, 0.0
    %v227 = vld [vmem:[%s3] sm:$0xff]
    %v228 = vld [vmem:[%s3 + $0x8] sm:$0xff]
    %v229 = vld [vmem:[%s3 + $0x10] sm:$0xff]
    %v230 = vld [vmem:[%s3 + $0x18] sm:$0xff]
    %v231 = vld [vmem:[%s4] sm:$0xff]
    %v232 = vld [vmem:[%s4 + $0x8] sm:$0xff]
    %v233 = vld [vmem:[%s4 + $0x10] sm:$0xff]
    %v234 = vld [vmem:[%s4 + $0x18] sm:$0xff]
    %236 = vset.pattern.permute.xlu0 0
    %237 = vperm.xlu0 %236, %v231
    %v238 = vpop.permute.xlu0 %237
    %241 = vset.pattern.permute.xlu0 0
    %242 = vperm.xlu0 %241, %v232
    %v243 = vpop.permute.xlu0 %242
    %246 = vset.pattern.permute.xlu0 0
    %247 = vperm.xlu0 %246, %v233
    %v248 = vpop.permute.xlu0 %247
    %251 = vset.pattern.permute.xlu0 0
    %252 = vperm.xlu0 %251, %v234
    %v253 = vpop.permute.xlu0 %252
    %vm255 = vcmask 261120
    %v257 = vsel %vm255, %v227, 0
    %v260 = vsel %vm255, %v228, 0
    %v263 = vsel %vm255, %v229, 0
    %v266 = vsel %vm255, %v230, 0
    %268 = vmatprep.subr.mxu0 0.0
    %269 = vmatpush1.msra.mxu0 %v223
    %270 = vmatprep.subr.mxu0 0.0
    %271 = vmatpush1.msra.mxu0 %v224
    %272 = vmatprep.subr.mxu0 0.0
    %273 = vmatpush1.msra.mxu0 %v225
    %274 = vmatprep.subr.mxu0 0.0
    %275 = vmatpush1.msra.mxu0 %v226
    %276 = vmatprep.subr.mxu0 0.0
    %277 = vmatpush1.msra.mxu0 0.0
    %278 = vmatprep.subr.mxu0 0.0
    %279 = vmatpush1.msra.mxu0 0.0
    %280 = vmatprep.subr.mxu0 0.0
    %281 = vmatpush1.msra.mxu0 0.0
    %282 = vmatprep.subr.mxu0 0.0
    %283 = vmatpush1.msra.mxu0 0.0
    %284 = vmatprep.subr.mxu0 0.0
    %285 = vmatpush1.msra.mxu0 0.0
    %286 = vmatprep.subr.mxu0 0.0
    %287 = vmatpush1.msra.mxu0 0.0
    %288 = vmatprep.subr.mxu0 0.0
    %289 = vmatpush1.msra.mxu0 0.0
    %290 = vmatprep.subr.mxu0 0.0
    %291 = vmatpush1.msra.mxu0 0.0
    %292 = vmatprep.subr.mxu0 0.0
    %293 = vmatpush1.msra.mxu0 0.0
    %294 = vmatprep.subr.mxu0 0.0
    %295 = vmatpush1.msra.mxu0 0.0
    %296 = vmatprep.subr.mxu0 0.0
    %297 = vmatpush1.msra.mxu0 0.0
    %298 = vmatprep.subr.mxu0 0.0
    %299 = vmatpush1.msra.mxu0 0.0
    %300 = vmatprep.subr.mxu0 0.0
    %301 = vmatpush1.msra.mxu0 0.0
    %302 = vmatprep.subr.mxu0 0.0
    %303 = vmatpush1.msra.mxu0 0.0
    %304 = vmatprep.subr.mxu0 0.0
    %305 = vmatpush1.msra.mxu0 0.0
    %306 = vmatprep.subr.mxu0 0.0
    %307 = vmatpush1.msra.mxu0 0.0
    %308 = vmatprep.subr.mxu0 0.0
    %309 = vmatpush1.msra.mxu0 0.0
    %310 = vmatprep.subr.mxu0 0.0
    %311 = vmatpush1.msra.mxu0 0.0
    %312 = vmatprep.subr.mxu0 0.0
    %313 = vmatpush1.msra.mxu0 0.0
    %314 = vmatprep.subr.mxu0 0.0
    %315 = vmatpush1.msra.mxu0 0.0
    %316 = vmatprep.subr.mxu0 0.0
    %317 = vmatpush1.msra.mxu0 0.0
    %318 = vmatprep.subr.mxu0 0.0
    %319 = vmatpush1.msra.mxu0 0.0
    %320 = vmatprep.subr.mxu0 0.0
    %321 = vmatpush1.msra.mxu0 0.0
    %322 = vmatprep.subr.mxu0 0.0
    %323 = vmatpush1.msra.mxu0 0.0
    %324 = vmatprep.subr.mxu0 0.0
    %325 = vmatpush1.msra.mxu0 0.0
    %326 = vmatprep.subr.mxu0 0.0
    %327 = vmatpush1.msra.mxu0 0.0
    %328 = vmatprep.subr.mxu0 0.0
    %329 = vmatpush1.msra.mxu0 0.0
    %330 = vmatprep.subr.mxu0 0.0
    %331 = vmatpush1.msra.mxu0 0.0
    %332 = vmatprep.mubr.f32.mxu0 0.0
    %333 = vmatmul.mubr.f32.gmra.mrb[0].mxu0 %v257
    %v334 = vpop.f32.mrb[0].mxu0
    %v335 = vadd.f32 %v238, %v334
    %v336 = vpop.f32.mrb[0].mxu0
    %337 = vmatprep.mubr.f32.mxu0 0.0
    %338 = vmatmul.mubr.f32.gmra.mrb[0].mxu0 %v260
    %v339 = vpop.f32.mrb[0].mxu0
    %v340 = vadd.f32 %v243, %v339
    %v341 = vpop.f32.mrb[0].mxu0
    %342 = vmatprep.mubr.f32.mxu0 0.0
    %343 = vmatmul.mubr.f32.gmra.mrb[0].mxu0 %v263
    %v344 = vpop.f32.mrb[0].mxu0
    %v345 = vadd.f32 %v248, %v344
    %v346 = vpop.f32.mrb[0].mxu0
    %347 = vmatprep.mubr.f32.mxu0 0.0
    %348 = vmatmul.mubr.f32.gmra.mrb[0].mxu0 %v266
    %v349 = vpop.f32.mrb[0].mxu0
    %v350 = vadd.f32 %v253, %v349
    %v351 = vpop.f32.mrb[0].mxu0
    %352 = vdwg.mxu0
    %v353 = vmax.f32 %v335, 0.0
    %v354 = vmax.f32 %v340, 0.0
    %v355 = vmax.f32 %v345, 0.0
    %v356 = vmax.f32 %v350, 0.0
    %v357 = vld [vmem:[%s5] sm:$0xf]
    %v358 = vld [vmem:[%s6] sm:$0xf]
    %360 = vset.pattern.permute.xlu0 0
    %361 = vperm.xlu0 %360, %v358
    %v362 = vpop.permute.xlu0 %361
    %v365 = vsel %vm255, %v357, 0
    %367 = vmatprep.subr.mxu0 0.0
    %368 = vmatpush1.msra.mxu0 %v353
    %369 = vmatprep.subr.mxu0 0.0
    %370 = vmatpush1.msra.mxu0 %v354
    %371 = vmatprep.subr.mxu0 0.0
    %372 = vmatpush1.msra.mxu0 %v355
    %373 = vmatprep.subr.mxu0 0.0
    %374 = vmatpush1.msra.mxu0 %v356
    %375 = vmatprep.subr.mxu0 0.0
    %376 = vmatpush1.msra.mxu0 0.0
    %377 = vmatprep.subr.mxu0 0.0
    %378 = vmatpush1.msra.mxu0 0.0
    %379 = vmatprep.subr.mxu0 0.0
    %380 = vmatpush1.msra.mxu0 0.0
    %381 = vmatprep.subr.mxu0 0.0
    %382 = vmatpush1.msra.mxu0 0.0
    %383 = vmatprep.subr.mxu0 0.0
    %384 = vmatpush1.msra.mxu0 0.0
    %385 = vmatprep.subr.mxu0 0.0
    %386 = vmatpush1.msra.mxu0 0.0
    %387 = vmatprep.subr.mxu0 0.0
    %388 = vmatpush1.msra.mxu0 0.0
    %389 = vmatprep.subr.mxu0 0.0
    %390 = vmatpush1.msra.mxu0 0.0
    %391 = vmatprep.subr.mxu0 0.0
    %392 = vmatpush1.msra.mxu0 0.0
    %393 = vmatprep.subr.mxu0 0.0
    %394 = vmatpush1.msra.mxu0 0.0
    %395 = vmatprep.subr.mxu0 0.0
    %396 = vmatpush1.msra.mxu0 0.0
    %397 = vmatprep.subr.mxu0 0.0
    %398 = vmatpush1.msra.mxu0 0.0
    %399 = vmatprep.subr.mxu0 0.0
    %400 = vmatpush1.msra.mxu0 0.0
    %401 = vmatprep.subr.mxu0 0.0
    %402 = vmatpush1.msra.mxu0 0.0
    %403 = vmatprep.subr.mxu0 0.0
    %404 = vmatpush1.msra.mxu0 0.0
    %405 = vmatprep.subr.mxu0 0.0
    %406 = vmatpush1.msra.mxu0 0.0
    %407 = vmatprep.subr.mxu0 0.0
    %408 = vmatpush1.msra.mxu0 0.0
    %409 = vmatprep.subr.mxu0 0.0
    %410 = vmatpush1.msra.mxu0 0.0
    %411 = vmatprep.subr.mxu0 0.0
    %412 = vmatpush1.msra.mxu0 0.0
    %413 = vmatprep.subr.mxu0 0.0
    %414 = vmatpush1.msra.mxu0 0.0
    %415 = vmatprep.subr.mxu0 0.0
    %416 = vmatpush1.msra.mxu0 0.0
    %417 = vmatprep.subr.mxu0 0.0
    %418 = vmatpush1.msra.mxu0 0.0
    %419 = vmatprep.subr.mxu0 0.0
    %420 = vmatpush1.msra.mxu0 0.0
    %421 = vmatprep.subr.mxu0 0.0
    %422 = vmatpush1.msra.mxu0 0.0
    %423 = vmatprep.subr.mxu0 0.0
    %424 = vmatpush1.msra.mxu0 0.0
    %425 = vmatprep.subr.mxu0 0.0
    %426 = vmatpush1.msra.mxu0 0.0
    %427 = vmatprep.subr.mxu0 0.0
    %428 = vmatpush1.msra.mxu0 0.0
    %429 = vmatprep.subr.mxu0 0.0
    %430 = vmatpush1.msra.mxu0 0.0
    %431 = vmatprep.mubr.f32.mxu0 0.0
    %432 = vmatmul.mubr.f32.gmra.mrb[0].mxu0 %v365
    %v433 = vpop.f32.mrb[0].mxu0
    %v434 = vadd.f32 %v362, %v433
    %v435 = vpop.f32.mrb[0].mxu0
    %436 = vdwg.mxu0
    %v437 = vld [vmem:[%s7] sm:$0xf]
    %v438 = vtanh.pop %v434
    %440 = vset.pattern.permute.xlu0 0
    %441 = vperm.xlu0 %440, %v437
    %v442 = vpop.permute.xlu0 %441
    %v444 = vmul.f32 %v442, %v438
    %v445 = vld [vmem:[%s8] sm:$0xf]
    %447 = vset.pattern.permute.xlu0 0
    %448 = vperm.xlu0 %447, %v445
    %v449 = vpop.permute.xlu0 %448
    %v451 = vadd.f32 %v444, %v449
    %452 = vst [vmem:[#allocation2] sm:$0xf] %v451
    // Predicated region
    $region38: #{tpu_custom_call.1} parent=1 // pred_check
      _
    $region39: #{tpu_custom_call.1} parent=1 // pred_check_branch
      %454 = sbr.rel (0) target = $region41
    $region40: #{tpu_custom_call.1} parent=1 // pred_region
      %s456 = ssub.s32 64, 64
      %457 = vsyncadd [#allocation3], %s456
      %s459 = sshll.u32 [#allocation2], 4
      %s460 = int_to_ptr.vmem [resolvable:$true] %s459
      %462 = dma.vmem_to_hbm [thread:$0]  %s460, 64, %s9, [#allocation3]
    $region41: #{tpu_custom_call.1} parent=1 // pred_fallthru
      _
    // Predicated region
    $region42: #{tpu_custom_call.1} parent=1 // pred_check
      _
    $region43: #{tpu_custom_call.1} parent=1 // pred_check_branch
      %464 = sbr.rel (0) target = $region45
    $region44: #{tpu_custom_call.1} parent=1 // pred_region
      %465 = dma.done [#allocation3], 64
    $region45: #{tpu_custom_call.1} parent=1 // pred_fallthru
      _
    %466 = vsyncpa [#allocation3], 1

</llo_original>
